<compile_context>
chip_gen: v5e
topology: v5e:2x2
jax: 0.10.0
libtpu: 0.0.40
codegen_flags: <defaults>
</compile_context>

<pallas_src>
import functools
import math

import jax
import jax.numpy as jnp
from jax.experimental import pallas as pl
from jax.experimental.pallas import tpu as pltpu


def _blr_kernel(logits_ref, tgt_ref, out_ref, *, alpha, beta, warmup, log_a, log_1ma):
    # logits_ref: (tm, C) float, tgt_ref: (tm, 1) int32, out_ref: (tm, 1) f32
    x = logits_ref[...].astype(jnp.float32)                  # (tm, C)
    tgt = tgt_ref[...]                                        # (tm, 1) int32

    # one-hot(target) via lane-iota comparison (F.one_hot equivalent)
    col = jax.lax.broadcasted_iota(jnp.int32, x.shape, 1)
    onehot = col == tgt                                       # bool (tm, C)

    # softmax along lanes; per-row reciprocal + broadcast multiply (no (tm,C) divide)
    m = jnp.max(x, axis=-1, keepdims=True)
    ez = jnp.exp(x - m)
    denom = jnp.sum(ez, axis=-1, keepdims=True)               # (tm, 1)
    pred = ez * (1.0 / denom)                                 # softmax(logits)

    # beta mask (warmup -> one-hot; otherwise pred > beta OR one-hot)
    if warmup:
        mask = onehot
    else:
        mask = jnp.logical_or(pred > beta, onehot)

    mp = jnp.where(mask, pred, 0.0)                           # masked pred
    beta_sum = jnp.sum(mp, axis=-1, keepdims=True)            # (tm, 1)
    non_beta_sum = jnp.sum(pred - mp, axis=-1, keepdims=True) # (tm, 1)

    # Closed-form KL(target_credal || softmax): target_credal = scale * pred with
    #   scale = (1-alpha)/beta_sum on the mask and alpha/non_beta_sum off it, so
    #   sum_c t_c*(log t_c - log p_c) = (1-a)*log((1-a)/bs) + a*log(a/nbs),
    # with xlogy-style zero guards (matching F.kl_div) when bs == 0 / nbs == 0.
    safe_bs = jnp.where(beta_sum > 0.0, beta_sum, 1.0)
    safe_nbs = jnp.where(non_beta_sum > 0.0, non_beta_sum, 1.0)
    term_in = jnp.where(
        beta_sum > 0.0, (1.0 - alpha) * (log_1ma - jnp.log(safe_bs)), 0.0
    )
    term_out = jnp.where(
        non_beta_sum > 0.0, alpha * (log_a - jnp.log(safe_nbs)), 0.0
    )
    divergence = term_in + term_out                           # (tm, 1)

    # rows whose prediction already lies inside the credal set contribute 0
    result = jnp.where(beta_sum >= 1.0 - alpha, 0.0, divergence)
    out_ref[...] = result


def _choose_tm(N, C, itemsize):
    # Aim for ~1 MiB of logits per block: double-buffered input stays far below
    # the 32 MiB scoped-VMEM default on v5e/v6e/v7x while amortizing the ~0.35 us
    # per-grid-step overhead. Multiple of 8 (16 for sub-32-bit logits).
    align = 8 if itemsize >= 4 else 16
    target_block_bytes = 1 << 20
    tm = target_block_bytes // max(1, C * itemsize)
    tm = max(align, (tm // align) * align)
    tm = min(tm, 8192)
    if tm >= N:
        return N  # single block covering all rows (block dim == full array dim is legal)
    return tm


def beta_label_relaxation_loss(
    logits, target, *, alpha=0.1, beta=0.2, warmup=True, tm=None
):
    alpha = float(max(alpha, 0.001))
    beta = float(beta)
    N, C = logits.shape
    itemsize = jnp.dtype(logits.dtype).itemsize
    align = 8 if itemsize >= 4 else 16

    if tm is None:
        tm = _choose_tm(N, C, itemsize)
    else:
        tm = min(int(tm), N)
        if tm != N and tm % align != 0:
            raise ValueError(f"tm must be a multiple of {align} (got {tm})")

    tgt2 = target.astype(jnp.int32).reshape(N, 1)
    grid = (pl.cdiv(N, tm),)

    kernel = functools.partial(
        _blr_kernel,
        alpha=alpha,
        beta=beta,
        warmup=bool(warmup),
        log_a=math.log(alpha),
        log_1ma=math.log(1.0 - alpha),
    )

    per_row = pl.pallas_call(
        kernel,
        out_shape=jax.ShapeDtypeStruct((N, 1), jnp.float32),
        grid=grid,
        in_specs=[
            pl.BlockSpec((tm, C), lambda i: (i, 0)),
            pl.BlockSpec((tm, 1), lambda i: (i, 0)),
        ],
        out_specs=pl.BlockSpec((tm, 1), lambda i: (i, 0)),
        compiler_params=pltpu.CompilerParams(dimension_semantics=("parallel",)),
        cost_estimate=pl.CostEstimate(
            flops=int(8 * N * C),
            transcendentals=int(N * C + 2 * N),
            bytes_accessed=int(N * C * itemsize + N * 4 + N * 4),
        ),
    )(logits, tgt2)

    # torch.mean over the batch (tiny reduction; also keeps the grid parallel)
    return jnp.sum(per_row) / N


def _reference(logits, target, *, alpha=0.1, beta=0.2, warmup=True):
    # pure-JAX reference mirroring the PyTorch forward (non-adaptive path)
    alpha = max(alpha, 0.001)
    C = logits.shape[-1]
    pred_log = jax.nn.log_softmax(logits, axis=-1)
    pred = jax.nn.softmax(logits, axis=-1)
    onehot = jax.nn.one_hot(target, C, dtype=jnp.float32) > 0
    mask = onehot if warmup else jnp.logical_or(pred > beta, onehot)
    maskf = mask.astype(jnp.float32)
    beta_sum = jnp.sum(maskf * pred, -1)
    non_beta_sum = jnp.sum((1.0 - maskf) * pred, -1)
    bsp = jnp.where(beta_sum[..., None] == 0.0, 0.0, pred / beta_sum[..., None])
    nbsp = jnp.where(non_beta_sum[..., None] == 0.0, 0.0, pred / non_beta_sum[..., None])
    tc = jnp.where(mask, (1.0 - alpha) * bsp, alpha * nbsp)
    kl = jnp.where(tc > 0.0, tc * (jnp.log(jnp.where(tc > 0.0, tc, 1.0)) - pred_log), 0.0)
    div = jnp.sum(kl, -1)
    res = jnp.where(beta_sum >= 1.0 - alpha, 0.0, div)
    return jnp.mean(res)


if __name__ == "__main__":
    N, C = 16, 10  # batch of 16 samples, 10 classes
    key = jax.random.PRNGKey(0)
    k1, k2 = jax.random.split(key)
    logits = jax.random.normal(k1, (N, C), dtype=jnp.float32) * 2.0
    target = jax.random.randint(k2, (N,), 0, C, dtype=jnp.int32)

    # warmup=True path (mask = one-hot), the module default
    out_w = beta_label_relaxation_loss(logits, target, alpha=0.1, beta=0.2, warmup=True)
    out_w = jax.block_until_ready(out_w)
    ref_w = _reference(logits, target, alpha=0.1, beta=0.2, warmup=True)
    assert jnp.allclose(out_w, ref_w, rtol=1e-4, atol=1e-5), (out_w, ref_w)

    # non-warmup path (mask = (pred > beta) | one-hot)
    out_n = beta_label_relaxation_loss(logits, target, alpha=0.1, beta=0.2, warmup=False)
    out_n = jax.block_until_ready(out_n)
    ref_n = _reference(logits, target, alpha=0.1, beta=0.2, warmup=False)
    assert jnp.allclose(out_n, ref_n, rtol=1e-4, atol=1e-5), (out_n, ref_n)

    print("KERNEL_OK")
</pallas_src>

<mosaic_0001>
module attributes {stable_mosaic.version = 11 : i64} {
  func.func @_blr_kernel(%arg0: i32, %arg1: memref<16x10xf32, #tpu.memory_space<vmem>>, %arg2: memref<16x1xi32, #tpu.memory_space<vmem>>, %arg3: memref<16x1xf32, #tpu.memory_space<vmem>>) attributes {dimension_semantics = [#tpu.dimension_semantics<parallel>], iteration_bounds = array<i64: 1>, scalar_prefetch = 0 : i64, scratch_operands = 0 : i64, tpu.core_type = #tpu.core_type<tc>, window_params = [{transform_indices = @transform_0, window_bounds = array<i64: 16, 10>}, {transform_indices = @transform_1, window_bounds = array<i64: 16, 1>}, {transform_indices = @transform_2, window_bounds = array<i64: 16, 1>}]} {
    %c0 = arith.constant 0 : index
    %c0_0 = arith.constant 0 : index
    %0 = vector.load %arg1[%c0, %c0_0] : memref<16x10xf32, #tpu.memory_space<vmem>>, vector<16x10xf32>
    %c0_1 = arith.constant 0 : index
    %c0_2 = arith.constant 0 : index
    %1 = vector.load %arg2[%c0_1, %c0_2] : memref<16x1xi32, #tpu.memory_space<vmem>>, vector<16x1xi32>
    %2 = tpu.iota {dimensions = array<i32: 1>} : vector<16x10xi32>
    %3 = vector.broadcast %1 : vector<16x1xi32> to vector<16x10xi32>
    %4 = arith.cmpi eq, %2, %3 : vector<16x10xi32>
    %cst = arith.constant dense<0xFF800000> : vector<16xf32>
    %5 = vector.multi_reduction <maximumf>, %0, %cst [1] : vector<16x10xf32> to vector<16xf32>
    %6 = vector.shape_cast %5 : vector<16xf32> to vector<16x1xf32>
    %7 = vector.broadcast %6 : vector<16x1xf32> to vector<16x10xf32>
    %8 = arith.subf %0, %7 : vector<16x10xf32>
    %9 = math.exp %8 : vector<16x10xf32>
    %cst_3 = arith.constant dense<0.000000e+00> : vector<16xf32>
    %10 = vector.multi_reduction <add>, %9, %cst_3 [1] : vector<16x10xf32> to vector<16xf32>
    %11 = vector.shape_cast %10 : vector<16xf32> to vector<16x1xf32>
    %cst_4 = arith.constant 1.000000e+00 : f32
    %12 = vector.broadcast %cst_4 : f32 to vector<16x1xf32>
    %13 = arith.divf %12, %11 : vector<16x1xf32>
    %14 = vector.broadcast %13 : vector<16x1xf32> to vector<16x10xf32>
    %15 = arith.mulf %9, %14 : vector<16x10xf32>
    %cst_5 = arith.constant 0.000000e+00 : f32
    %16 = vector.broadcast %cst_5 : f32 to vector<16x10xf32>
    %17 = arith.select %4, %15, %16 : vector<16x10xi1>, vector<16x10xf32>
    %cst_6 = arith.constant dense<0.000000e+00> : vector<16xf32>
    %18 = vector.multi_reduction <add>, %17, %cst_6 [1] : vector<16x10xf32> to vector<16xf32>
    %19 = vector.shape_cast %18 : vector<16xf32> to vector<16x1xf32>
    %20 = arith.subf %15, %17 : vector<16x10xf32>
    %cst_7 = arith.constant dense<0.000000e+00> : vector<16xf32>
    %21 = vector.multi_reduction <add>, %20, %cst_7 [1] : vector<16x10xf32> to vector<16xf32>
    %22 = vector.shape_cast %21 : vector<16xf32> to vector<16x1xf32>
    %cst_8 = arith.constant 0.000000e+00 : f32
    %23 = vector.broadcast %cst_8 : f32 to vector<16x1xf32>
    %24 = arith.cmpf ogt, %19, %23 : vector<16x1xf32>
    %cst_9 = arith.constant 1.000000e+00 : f32
    %25 = vector.broadcast %cst_9 : f32 to vector<16x1xf32>
    %26 = arith.select %24, %19, %25 : vector<16x1xi1>, vector<16x1xf32>
    %cst_10 = arith.constant 0.000000e+00 : f32
    %27 = vector.broadcast %cst_10 : f32 to vector<16x1xf32>
    %28 = arith.cmpf ogt, %22, %27 : vector<16x1xf32>
    %cst_11 = arith.constant 1.000000e+00 : f32
    %29 = vector.broadcast %cst_11 : f32 to vector<16x1xf32>
    %30 = arith.select %28, %22, %29 : vector<16x1xi1>, vector<16x1xf32>
    %cst_12 = arith.constant 0.000000e+00 : f32
    %31 = vector.broadcast %cst_12 : f32 to vector<16x1xf32>
    %32 = arith.cmpf ogt, %19, %31 : vector<16x1xf32>
    %33 = math.log %26 : vector<16x1xf32>
    %cst_13 = arith.constant -0.105360515 : f32
    %34 = vector.broadcast %cst_13 : f32 to vector<16x1xf32>
    %35 = arith.subf %34, %33 : vector<16x1xf32>
    %cst_14 = arith.constant 0.899999976 : f32
    %36 = vector.broadcast %cst_14 : f32 to vector<16x1xf32>
    %37 = arith.mulf %36, %35 : vector<16x1xf32>
    %cst_15 = arith.constant 0.000000e+00 : f32
    %38 = vector.broadcast %cst_15 : f32 to vector<16x1xf32>
    %39 = arith.select %32, %37, %38 : vector<16x1xi1>, vector<16x1xf32>
    %cst_16 = arith.constant 0.000000e+00 : f32
    %40 = vector.broadcast %cst_16 : f32 to vector<16x1xf32>
    %41 = arith.cmpf ogt, %22, %40 : vector<16x1xf32>
    %42 = math.log %30 : vector<16x1xf32>
    %cst_17 = arith.constant -2.30258512 : f32
    %43 = vector.broadcast %cst_17 : f32 to vector<16x1xf32>
    %44 = arith.subf %43, %42 : vector<16x1xf32>
    %cst_18 = arith.constant 1.000000e-01 : f32
    %45 = vector.broadcast %cst_18 : f32 to vector<16x1xf32>
    %46 = arith.mulf %45, %44 : vector<16x1xf32>
    %cst_19 = arith.constant 0.000000e+00 : f32
    %47 = vector.broadcast %cst_19 : f32 to vector<16x1xf32>
    %48 = arith.select %41, %46, %47 : vector<16x1xi1>, vector<16x1xf32>
    %49 = arith.addf %39, %48 : vector<16x1xf32>
    %cst_20 = arith.constant 0.899999976 : f32
    %50 = vector.broadcast %cst_20 : f32 to vector<16x1xf32>
    %51 = arith.cmpf oge, %19, %50 : vector<16x1xf32>
    %cst_21 = arith.constant 0.000000e+00 : f32
    %52 = vector.broadcast %cst_21 : f32 to vector<16x1xf32>
    %53 = arith.select %51, %52, %49 : vector<16x1xi1>, vector<16x1xf32>
    %c0_22 = arith.constant 0 : index
    %c0_23 = arith.constant 0 : index
    %54 = vector.load %arg3[%c0_22, %c0_23] : memref<16x1xf32, #tpu.memory_space<vmem>>, vector<16x1xf32>
    tpu.vector_store %arg3[%c0_22, %c0_23], %53 {strides = array<i32>} : memref<16x1xf32, #tpu.memory_space<vmem>>, vector<16x1xf32>,
    return
  }
  func.func @transform_0(%arg0: i32) -> (i32, i32) {
    %c0_i32 = arith.constant 0 : i32
    %c0_i32_0 = arith.constant 0 : i32
    return %arg0, %c0_i32 : i32, i32
  }
  func.func @transform_1(%arg0: i32) -> (i32, i32) {
    %c0_i32 = arith.constant 0 : i32
    %c0_i32_0 = arith.constant 0 : i32
    return %arg0, %c0_i32 : i32, i32
  }
  func.func @transform_2(%arg0: i32) -> (i32, i32) {
    %c0_i32 = arith.constant 0 : i32
    %c0_i32_0 = arith.constant 0 : i32
    return %arg0, %c0_i32 : i32, i32
  }
}

</mosaic_0001>

<llo_original>
// kernel: tpu_custom_call.1
$region0: #{tpu_custom_call.1}
  #allocation0 [shape = 'u32[]', space=smem, size = 0x4, offset = 0x4, fixed_abs, tag = 'smem constant byte address 0x4 - core index']
  #allocation1 [shape = 'u32[72,128]{1,0:T(1,128)}', space=vmem, size = 0x9000, scoped, tag = 'internal scratch']
  %s0 = inlined_call_operand.vmem [shape: f32[16,10], index: 0, kind: input, shape index: {}]
  %s1 = inlined_call_operand.vmem [shape: s32[16,1], index: 1, kind: input, shape index: {}]
  %s2 = inlined_call_operand.vmem [shape: f32[16,1], index: 2, kind: output, shape index: {}]
  %s3 = sld [smem:[#allocation0]]
  $region18: #{tpu_custom_call.1} parent=0
    _
  %s5 = ssub.s32 1, %s3
  %s6 = scalar_select 0, %s5, %s3
  // Predicated region
  $region2: #{tpu_custom_call.1} parent=0 // pred_check
    _
  $region3: #{tpu_custom_call.1} parent=0 // pred_check_branch
    %8 = sbr.rel (0) target = $region5
  $region4: #{tpu_custom_call.1} parent=0 // pred_region
    _
  $region5: #{tpu_custom_call.1} parent=0 // pred_fallthru
    _
  // Predicated region
  $region6: #{tpu_custom_call.1} parent=0 // pred_check
    _
  $region7: #{tpu_custom_call.1} parent=0 // pred_check_branch
    %10 = sbr.rel (0) target = $region9
  $region8: #{tpu_custom_call.1} parent=0 // pred_region
    _
  $region9: #{tpu_custom_call.1} parent=0 // pred_fallthru
    _
  %v11 = vld [vmem:[%s0] sm:$0xff]
  %v12 = vld [vmem:[%s0 + $0x8] sm:$0xff]
  %v13 = vld [vmem:[%s1] sm:$0xff]
  %v14 = vld [vmem:[%s1 + $0x8] sm:$0xff]
  %v15 = vlaneseq
  %v16 = vand.u32 %v15, 127
  %17 = vset.pattern.permute.xlu0 0
  %18 = vperm.xlu0 %17, %v13
  %v19 = vpop.permute.xlu0 %18
  %20 = vset.pattern.permute.xlu0 0
  %21 = vperm.xlu0 %20, %v14
  %v22 = vpop.permute.xlu0 %21
  %vm23 = vcmp.eq.s32.totalorder %v16, %v19
  %vm24 = vcmp.eq.s32.totalorder %v16, %v22
  %vm25 = vcmask 80896
  %v26 = vsel %vm25, %v11, -inf
  %27 = vmax.xlane.f32.xlu0 %v26
  %v28 = vpop.xlane.xlu0 %27
  %v29 = vsel %vm25, %v12, -inf
  %30 = vmax.xlane.f32.xlu0 %v29
  %v31 = vpop.xlane.xlu0 %30
  %v32 = vsub.f32 %v11, %v28
  %v33 = vsub.f32 %v12, %v31
  %v34 = vmul.f32 %v32, 1.442695
  %v35 = vpow.pop %v34
  %v36 = vmul.f32 %v33, 1.442695
  %v37 = vpow.pop %v36
  %v38 = vsel %vm25, %v35, 0.0
  %39 = vadd.xlane.f32.xlu0 %v38
  %v40 = vpop.xlane.xlu0 %39
  %v41 = vsel %vm25, %v37, 0.0
  %42 = vadd.xlane.f32.xlu0 %v41
  %v43 = vpop.xlane.xlu0 %42
  %v44 = vrcp.pop %v40
  %v45 = vmul.f32 %v40, %v44
  %v46 = vsub.f32 1.0, %v45
  %v47 = vmul.f32 %v44, %v46
  %v48 = vadd.f32 %v44, %v47
  %vm49 = vweird.f32 %v40
  %vm50 = vweird.f32 %v44
  %vm51 = vmor %vm49, %vm50
  %v52 = vsel %vm51, %v44, %v48
  %v53 = vand.u32 2147483647, %v40
  %vm54 = vcmp.eq.f32.partialorder %v53, 8.507059e+37
  %v55 = vand.u32 %v40, 2147483648
  %v56 = vor.u32 1.1754944e-38, %v55
  %v57 = vsel %vm54, %v56, %v52
  %v58 = vmul.f32 1.0, %v57
  %v59 = vrcp.pop %v43
  %v60 = vmul.f32 %v43, %v59
  %v61 = vsub.f32 1.0, %v60
  %v62 = vmul.f32 %v59, %v61
  %v63 = vadd.f32 %v59, %v62
  %vm64 = vweird.f32 %v43
  %vm65 = vweird.f32 %v59
  %vm66 = vmor %vm64, %vm65
  %v67 = vsel %vm66, %v59, %v63
  %v68 = vand.u32 2147483647, %v43
  %vm69 = vcmp.eq.f32.partialorder %v68, 8.507059e+37
  %v70 = vand.u32 %v43, 2147483648
  %v71 = vor.u32 1.1754944e-38, %v70
  %v72 = vsel %vm69, %v71, %v67
  %v73 = vmul.f32 1.0, %v72
  %v74 = vmul.f32 %v35, %v58
  %v75 = vmul.f32 %v37, %v73
  %v76 = vsel %vm23, %v74, 0.0
  %v77 = vsel %vm24, %v75, 0.0
  %v78 = vsel %vm25, %v76, 0.0
  %79 = vadd.xlane.f32.xlu0 %v78
  %v80 = vpop.xlane.xlu0 %79
  %v81 = vsel %vm25, %v77, 0.0
  %82 = vadd.xlane.f32.xlu0 %v81
  %v83 = vpop.xlane.xlu0 %82
  %v84 = vsub.f32 %v74, %v76
  %v85 = vsub.f32 %v75, %v77
  %v86 = vsel %vm25, %v84, 0.0
  %87 = vadd.xlane.f32.xlu0 %v86
  %v88 = vpop.xlane.xlu0 %87
  %v89 = vsel %vm25, %v85, 0.0
  %90 = vadd.xlane.f32.xlu0 %v89
  %v91 = vpop.xlane.xlu0 %90
  %vm92 = vcmp.gt.f32.partialorder %v80, 0.0
  %vm93 = vcmp.gt.f32.partialorder %v83, 0.0
  %v94 = vsel %vm92, %v80, 1.0
  %v95 = vsel %vm93, %v83, 1.0
  %vm96 = vcmp.gt.f32.partialorder %v88, 0.0
  %vm97 = vcmp.gt.f32.partialorder %v91, 0.0
  %v98 = vsel %vm96, %v88, 1.0
  %v99 = vsel %vm97, %v91, 1.0
  %v100 = vlog2.pop %v94
  %v101 = vmul.f32 %v100, 0.6931472
  %v102 = vlog2.pop %v95
  %v103 = vmul.f32 %v102, 0.6931472
  %v104 = vsub.f32 -0.105360515, %v101
  %v105 = vsub.f32 -0.105360515, %v103
  %v106 = vmul.f32 %v104, 0.9
  %v107 = vmul.f32 %v105, 0.9
  %v108 = vsel %vm92, %v106, 0.0
  %v109 = vsel %vm93, %v107, 0.0
  %v110 = vlog2.pop %v98
  %v111 = vmul.f32 %v110, 0.6931472
  %v112 = vlog2.pop %v99
  %v113 = vmul.f32 %v112, 0.6931472
  %v114 = vsub.f32 -2.3025851, %v111
  %v115 = vsub.f32 -2.3025851, %v113
  %v116 = vmul.f32 %v114, 0.1
  %v117 = vmul.f32 %v115, 0.1
  %v118 = vsel %vm96, %v116, 0.0
  %v119 = vsel %vm97, %v117, 0.0
  %v120 = vadd.f32 %v108, %v118
  %v121 = vadd.f32 %v109, %v119
  %vm122 = vcmp.ge.f32.partialorder %v80, 0.9
  %vm123 = vcmp.ge.f32.partialorder %v83, 0.9
  %v124 = vsel %vm122, 0.0, %v120
  %v125 = vsel %vm123, 0.0, %v121
  %vm126 = vcmask 7168
  %127 = vst.msk [vmem:[%s2] sm:$0xff] %vm126, %v124
  %128 = vst.msk [vmem:[%s2 + $0x8] sm:$0xff] %vm126, %v125
  // Predicated region
  $region10: #{tpu_custom_call.1} parent=0 // pred_check
    _
  $region11: #{tpu_custom_call.1} parent=0 // pred_check_branch
    %130 = sbr.rel (0) target = $region13
  $region12: #{tpu_custom_call.1} parent=0 // pred_region
    _
  $region13: #{tpu_custom_call.1} parent=0 // pred_fallthru
    _
  // Predicated region
  $region14: #{tpu_custom_call.1} parent=0 // pred_check
    _
  $region15: #{tpu_custom_call.1} parent=0 // pred_check_branch
    %132 = sbr.rel (0) target = $region17
  $region16: #{tpu_custom_call.1} parent=0 // pred_region
    _
  $region17: #{tpu_custom_call.1} parent=0 // pred_fallthru
    _

</llo_original>
